<compile_context>
chip_gen: v5e
topology: v5e:2x2
jax: 0.10.0
libtpu: 0.0.40
codegen_flags: <defaults>
</compile_context>

<pallas_src>
import functools
import math

import jax
import jax.numpy as jnp
from jax.experimental import pallas as pl
from jax.experimental.pallas import tpu as pltpu


def _ce_kernel(logits_ref, tgt_ref, nll_ref, *, num_classes):
    """One grid step: accumulate per-pixel NLL into the resident VMEM block.

    Works for both block layouts:
      * (Nb, C, R, 128) -- dense pixel tiles (HW % 128 == 0), class axis leading
      * (1,  C, TH)     -- fallback for ragged spatial sizes
    All class-axis work is unrolled elementwise over leading-dim slabs.
    """

    @pl.when(pl.program_id(2) == 0)
    def _():
        nll_ref[...] = jnp.zeros_like(nll_ref)

    x = logits_ref[...].astype(jnp.float32)      # cast in-kernel (bf16 stays bf16 in HBM)
    tgt = tgt_ref[...]                           # int32

    # Running max over the class axis (elementwise VPU, no XLU).
    m = x[:, 0:1]
    for c in range(1, num_classes):
        m = jnp.maximum(m, x[:, c:c + 1])

    # sum-exp + target-class select in one pass over C.
    s = jnp.zeros_like(m)
    x_tgt = jnp.zeros_like(m)
    for c in range(num_classes):
        xc = x[:, c:c + 1]
        s = s + jnp.exp(xc - m)
        x_tgt = x_tgt + jnp.where(tgt == c, xc, 0.0)

    lse = jnp.log(s)

    # Negative targets (ignore_index) and padded / out-of-bounds pixels
    # (sentinel -1) contribute nothing.  jnp.where (not a multiply) so garbage
    # logits from OOB tail blocks can never leak NaN/Inf into the sum.
    valid = tgt >= 0
    nll_ref[...] += jnp.where(valid, (m - x_tgt) + lse, 0.0)


def _vmem_capacity_bytes():
    try:
        return int(pltpu.get_tpu_info().vmem_capacity_bytes)
    except Exception:
        return 128 * 1024 * 1024


def cross_entropy_loss_2d(outputs, targets):
    """outputs: (N, C, H, W) float logits (f32 or bf16);
    targets:  (N, H, W) int class ids (negative => ignored, as ignore_index).
    Returns mean cross-entropy == NLLLoss(log_softmax(outputs, dim=1), targets).
    """
    # TODO(synk): optional per-class NLLLoss `weight` (module default None) not implemented.
    # TODO(synk): PyTorch errors on targets >= C or negative targets != ignore_index;
    #             here all negative targets are ignored and targets >= C are undefined.
    N, C, H, W = outputs.shape
    HW = H * W
    itemsize = jnp.dtype(outputs.dtype).itemsize

    vmem_cap = _vmem_capacity_bytes()
    budget = vmem_cap // 4        # total in-flight VMEM target (32 MiB on v5e/v6e, 16 MiB on v7x)

    tgt_flat = targets.reshape(N, HW).astype(jnp.int32)

    if HW % 128 == 0:
        # ---------------- dense path: pixels viewed as (rows, 128) ----------------
        r_total = HW // 128
        # bytes per pixel in flight: 2x dbl-buffered logits + ~4x f32 temps
        # + 2x targets + resident accumulator
        per_px = C * (2 * itemsize + 16) + 12
        max_px = max(128, budget // per_px)

        if HW <= max_px:
            rows = r_total
            # tiny images: pack several images per grid step (Nb | N) to keep DMAs large
            nb_cap = max(1, max_px // HW)
            nb = 1
            for d in range(min(N, nb_cap), 0, -1):
                if N % d == 0:
                    nb = d
                    break
        else:
            nb = 1
            rows = max(8, (min(r_total, max_px // 128) // 8) * 8)

        n_blocks = N // nb
        t_total = pl.cdiv(r_total, rows)
        # Pixel axis also megacore-splittable (v7x: 2 TCs even when N == 1).
        t_outer = 2 if (t_total % 2 == 0 and t_total >= 2) else 1
        t_inner = t_total // t_outer

        rows_pad = t_total * rows
        if rows_pad * 128 > HW:
            tgt_flat = jnp.pad(tgt_flat, ((0, 0), (0, rows_pad * 128 - HW)),
                               constant_values=-1)
        logits = outputs.reshape(N, C, r_total, 128)     # pure view, no HBM copy
        tgt_in = tgt_flat.reshape(N, 1, rows_pad, 128)

        lspec = pl.BlockSpec((nb, C, rows, 128),
                             lambda b, to, ti: (b, 0, to * t_inner + ti, 0))
        tspec = pl.BlockSpec((nb, 1, rows, 128),
                             lambda b, to, ti: (b, 0, to * t_inner + ti, 0))
        ospec = pl.BlockSpec((nb, 1, rows, 128),
                             lambda b, to, ti: (b, to, 0, 0))
        out_shape = jax.ShapeDtypeStruct((N, t_outer, rows, 128), jnp.float32)
        grid = (n_blocks, t_outer, t_inner)

        logits_blk = nb * C * rows * 128 * itemsize
        f32_tmp = nb * C * rows * 128 * 4
        aux_blk = nb * rows * 128 * 4
    else:
        # -------- fallback for ragged HW: lane-major (1, C, TH) tiles, no logits pad --------
        c_pad = ((C + 7) // 8) * 8                       # sublane padding of the (C, TH) tile
        per_px = c_pad * (2 * itemsize + 16) + 8 * 12
        max_px = max(128, (budget // per_px // 128) * 128)
        th = min(((HW + 127) // 128) * 128, max_px)
        t_total = pl.cdiv(HW, th)
        hw_pad = t_total * th
        if hw_pad > HW:
            tgt_flat = jnp.pad(tgt_flat, ((0, 0), (0, hw_pad - HW)),
                               constant_values=-1)
        logits = outputs.reshape(N, C, HW)               # pure view, no HBM copy
        tgt_in = tgt_flat.reshape(N, 1, hw_pad)

        lspec = pl.BlockSpec((1, C, th), lambda b, to, ti: (b, 0, ti))
        tspec = pl.BlockSpec((1, 1, th), lambda b, to, ti: (b, 0, ti))
        ospec = pl.BlockSpec((1, 1, th), lambda b, to, ti: (b, 0, 0))
        out_shape = jax.ShapeDtypeStruct((N, 1, th), jnp.float32)
        grid = (N, 1, t_total)

        logits_blk = c_pad * th * itemsize
        f32_tmp = c_pad * th * 4
        aux_blk = 8 * th * 4

    # VMEM estimate: double-buffered logits + targets, f32 temps, resident accumulator.
    vmem_est = 2 * logits_blk + 4 * f32_tmp + 3 * aux_blk + (4 << 20)
    vmem_limit = int(min(vmem_cap * 3 // 4, max(vmem_est, 32 << 20)))

    cost = pl.CostEstimate(
        flops=6 * N * C * HW,
        transcendentals=N * (C + 1) * HW,
        bytes_accessed=N * C * HW * itemsize + N * HW * 4
        + 4 * math.prod(out_shape.shape),
    )

    nll_parts = pl.pallas_call(
        functools.partial(_ce_kernel, num_classes=C),
        out_shape=out_shape,
        grid=grid,
        in_specs=[lspec, tspec],
        out_specs=ospec,
        compiler_params=pltpu.CompilerParams(
            dimension_semantics=("parallel", "parallel", "arbitrary"),
            vmem_limit_bytes=vmem_limit,
        ),
        cost_estimate=cost,
    )(logits, tgt_in)

    total = jnp.sum(nll_parts)
    # Denominator from the small target tensor in XLA (no in-kernel count).
    # Matches PyTorch mean reduction: 0/0 -> NaN when every pixel is ignored.
    denom = jnp.sum((targets >= 0).astype(jnp.float32))
    return total / denom


if __name__ == "__main__":
    key = jax.random.PRNGKey(0)
    k1, k2 = jax.random.split(key)

    N, C, H, W = 2, 4, 16, 16
    outputs = jax.random.normal(k1, (N, C, H, W), dtype=jnp.float32)
    targets = jax.random.randint(k2, (N, H, W), 0, C, dtype=jnp.int32)

    loss = cross_entropy_loss_2d(outputs, targets)
    loss = jax.block_until_ready(loss)

    # pure-JAX reference (glue-level check, silent on success)
    logp_ref = jax.nn.log_softmax(outputs, axis=1)
    nll_ref = -jnp.take_along_axis(logp_ref, targets[:, None, :, :], axis=1)
    ref = jnp.mean(nll_ref)
    assert jnp.allclose(loss, ref, atol=1e-5, rtol=1e-5), (loss, ref)

    print("KERNEL_OK")
</pallas_src>

<mosaic_0001>
module attributes {stable_mosaic.version = 11 : i64} {
  func.func @_ce_kernel(%arg0: i32, %arg1: i32, %arg2: i32, %arg3: memref<2x4x2x128xf32, #tpu.memory_space<vmem>>, %arg4: memref<2x1x2x128xi32, #tpu.memory_space<vmem>>, %arg5: memref<2x1x2x128xf32, #tpu.memory_space<vmem>>) attributes {dimension_semantics = [#tpu.dimension_semantics<parallel>, #tpu.dimension_semantics<parallel>, #tpu.dimension_semantics<arbitrary>], iteration_bounds = array<i64: 1, 1, 1>, scalar_prefetch = 0 : i64, scratch_operands = 0 : i64, tpu.core_type = #tpu.core_type<tc>, window_params = [{transform_indices = @transform_0, window_bounds = array<i64: 2, 4, 2, 128>}, {transform_indices = @transform_1, window_bounds = array<i64: 2, 1, 2, 128>}, {transform_indices = @transform_2, window_bounds = array<i64: 2, 1, 2, 128>}]} {
    %c0_i32 = arith.constant 0 : i32
    %0 = arith.cmpi eq, %arg2, %c0_i32 : i32
    %1 = arith.extui %0 : i1 to i32
    %c0_i32_0 = arith.constant 0 : i32
    %2 = arith.cmpi ne, %1, %c0_i32_0 : i32
    scf.if %2 {
      %cst_24 = arith.constant 0.000000e+00 : f32
      %60 = vector.broadcast %cst_24 : f32 to vector<2x1x2x128xf32>
      %c0_25 = arith.constant 0 : index
      %c0_26 = arith.constant 0 : index
      %c0_27 = arith.constant 0 : index
      %c0_28 = arith.constant 0 : index
      %61 = vector.load %arg5[%c0_25, %c0_26, %c0_27, %c0_28] : memref<2x1x2x128xf32, #tpu.memory_space<vmem>>, vector<2x1x2x128xf32>
      tpu.vector_store %arg5[%c0_25, %c0_26, %c0_27, %c0_28], %60 {strides = array<i32>} : memref<2x1x2x128xf32, #tpu.memory_space<vmem>>, vector<2x1x2x128xf32>,
    } else {
    }
    %c0 = arith.constant 0 : index
    %c0_1 = arith.constant 0 : index
    %c0_2 = arith.constant 0 : index
    %c0_3 = arith.constant 0 : index
    %3 = vector.load %arg3[%c0, %c0_1, %c0_2, %c0_3] : memref<2x4x2x128xf32, #tpu.memory_space<vmem>>, vector<2x4x2x128xf32>
    %c0_4 = arith.constant 0 : index
    %c0_5 = arith.constant 0 : index
    %c0_6 = arith.constant 0 : index
    %c0_7 = arith.constant 0 : index
    %4 = vector.load %arg4[%c0_4, %c0_5, %c0_6, %c0_7] : memref<2x1x2x128xi32, #tpu.memory_space<vmem>>, vector<2x1x2x128xi32>
    %5 = vector.extract_strided_slice %3 {offsets = [0, 0, 0, 0], sizes = [2, 1, 2, 128], strides = [1, 1, 1, 1]} : vector<2x4x2x128xf32> to vector<2x1x2x128xf32>
    %6 = vector.extract_strided_slice %3 {offsets = [0, 1, 0, 0], sizes = [2, 1, 2, 128], strides = [1, 1, 1, 1]} : vector<2x4x2x128xf32> to vector<2x1x2x128xf32>
    %7 = arith.maximumf %5, %6 : vector<2x1x2x128xf32>
    %8 = vector.extract_strided_slice %3 {offsets = [0, 2, 0, 0], sizes = [2, 1, 2, 128], strides = [1, 1, 1, 1]} : vector<2x4x2x128xf32> to vector<2x1x2x128xf32>
    %9 = arith.maximumf %7, %8 : vector<2x1x2x128xf32>
    %10 = vector.extract_strided_slice %3 {offsets = [0, 3, 0, 0], sizes = [2, 1, 2, 128], strides = [1, 1, 1, 1]} : vector<2x4x2x128xf32> to vector<2x1x2x128xf32>
    %11 = arith.maximumf %9, %10 : vector<2x1x2x128xf32>
    %cst = arith.constant 0.000000e+00 : f32
    %12 = vector.broadcast %cst : f32 to vector<2x1x2x128xf32>
    %cst_8 = arith.constant 0.000000e+00 : f32
    %13 = vector.broadcast %cst_8 : f32 to vector<2x1x2x128xf32>
    %14 = vector.extract_strided_slice %3 {offsets = [0, 0, 0, 0], sizes = [2, 1, 2, 128], strides = [1, 1, 1, 1]} : vector<2x4x2x128xf32> to vector<2x1x2x128xf32>
    %15 = arith.subf %14, %11 : vector<2x1x2x128xf32>
    %16 = math.exp %15 : vector<2x1x2x128xf32>
    %17 = arith.addf %12, %16 : vector<2x1x2x128xf32>
    %c0_i32_9 = arith.constant 0 : i32
    %18 = vector.broadcast %c0_i32_9 : i32 to vector<2x1x2x128xi32>
    %19 = arith.cmpi eq, %4, %18 : vector<2x1x2x128xi32>
    %cst_10 = arith.constant 0.000000e+00 : f32
    %20 = vector.broadcast %cst_10 : f32 to vector<2x1x2x128xf32>
    %21 = arith.select %19, %14, %20 : vector<2x1x2x128xi1>, vector<2x1x2x128xf32>
    %22 = arith.addf %13, %21 : vector<2x1x2x128xf32>
    %23 = vector.extract_strided_slice %3 {offsets = [0, 1, 0, 0], sizes = [2, 1, 2, 128], strides = [1, 1, 1, 1]} : vector<2x4x2x128xf32> to vector<2x1x2x128xf32>
    %24 = arith.subf %23, %11 : vector<2x1x2x128xf32>
    %25 = math.exp %24 : vector<2x1x2x128xf32>
    %26 = arith.addf %17, %25 : vector<2x1x2x128xf32>
    %c1_i32 = arith.constant 1 : i32
    %27 = vector.broadcast %c1_i32 : i32 to vector<2x1x2x128xi32>
    %28 = arith.cmpi eq, %4, %27 : vector<2x1x2x128xi32>
    %cst_11 = arith.constant 0.000000e+00 : f32
    %29 = vector.broadcast %cst_11 : f32 to vector<2x1x2x128xf32>
    %30 = arith.select %28, %23, %29 : vector<2x1x2x128xi1>, vector<2x1x2x128xf32>
    %31 = arith.addf %22, %30 : vector<2x1x2x128xf32>
    %32 = vector.extract_strided_slice %3 {offsets = [0, 2, 0, 0], sizes = [2, 1, 2, 128], strides = [1, 1, 1, 1]} : vector<2x4x2x128xf32> to vector<2x1x2x128xf32>
    %33 = arith.subf %32, %11 : vector<2x1x2x128xf32>
    %34 = math.exp %33 : vector<2x1x2x128xf32>
    %35 = arith.addf %26, %34 : vector<2x1x2x128xf32>
    %c2_i32 = arith.constant 2 : i32
    %36 = vector.broadcast %c2_i32 : i32 to vector<2x1x2x128xi32>
    %37 = arith.cmpi eq, %4, %36 : vector<2x1x2x128xi32>
    %cst_12 = arith.constant 0.000000e+00 : f32
    %38 = vector.broadcast %cst_12 : f32 to vector<2x1x2x128xf32>
    %39 = arith.select %37, %32, %38 : vector<2x1x2x128xi1>, vector<2x1x2x128xf32>
    %40 = arith.addf %31, %39 : vector<2x1x2x128xf32>
    %41 = vector.extract_strided_slice %3 {offsets = [0, 3, 0, 0], sizes = [2, 1, 2, 128], strides = [1, 1, 1, 1]} : vector<2x4x2x128xf32> to vector<2x1x2x128xf32>
    %42 = arith.subf %41, %11 : vector<2x1x2x128xf32>
    %43 = math.exp %42 : vector<2x1x2x128xf32>
    %44 = arith.addf %35, %43 : vector<2x1x2x128xf32>
    %c3_i32 = arith.constant 3 : i32
    %45 = vector.broadcast %c3_i32 : i32 to vector<2x1x2x128xi32>
    %46 = arith.cmpi eq, %4, %45 : vector<2x1x2x128xi32>
    %cst_13 = arith.constant 0.000000e+00 : f32
    %47 = vector.broadcast %cst_13 : f32 to vector<2x1x2x128xf32>
    %48 = arith.select %46, %41, %47 : vector<2x1x2x128xi1>, vector<2x1x2x128xf32>
    %49 = arith.addf %40, %48 : vector<2x1x2x128xf32>
    %50 = math.log %44 : vector<2x1x2x128xf32>
    %c0_i32_14 = arith.constant 0 : i32
    %51 = vector.broadcast %c0_i32_14 : i32 to vector<2x1x2x128xi32>
    %52 = arith.cmpi sge, %4, %51 : vector<2x1x2x128xi32>
    %c0_15 = arith.constant 0 : index
    %c0_16 = arith.constant 0 : index
    %c0_17 = arith.constant 0 : index
    %c0_18 = arith.constant 0 : index
    %53 = vector.load %arg5[%c0_15, %c0_16, %c0_17, %c0_18] : memref<2x1x2x128xf32, #tpu.memory_space<vmem>>, vector<2x1x2x128xf32>
    %54 = arith.subf %11, %49 : vector<2x1x2x128xf32>
    %55 = arith.addf %54, %50 : vector<2x1x2x128xf32>
    %cst_19 = arith.constant 0.000000e+00 : f32
    %56 = vector.broadcast %cst_19 : f32 to vector<2x1x2x128xf32>
    %57 = arith.select %52, %55, %56 : vector<2x1x2x128xi1>, vector<2x1x2x128xf32>
    %58 = arith.addf %53, %57 : vector<2x1x2x128xf32>
    %c0_20 = arith.constant 0 : index
    %c0_21 = arith.constant 0 : index
    %c0_22 = arith.constant 0 : index
    %c0_23 = arith.constant 0 : index
    %59 = vector.load %arg5[%c0_20, %c0_21, %c0_22, %c0_23] : memref<2x1x2x128xf32, #tpu.memory_space<vmem>>, vector<2x1x2x128xf32>
    tpu.vector_store %arg5[%c0_20, %c0_21, %c0_22, %c0_23], %58 {strides = array<i32>} : memref<2x1x2x128xf32, #tpu.memory_space<vmem>>, vector<2x1x2x128xf32>,
    return
  }
  func.func @transform_0(%arg0: i32, %arg1: i32, %arg2: i32) -> (i32, i32, i32, i32) {
    %c1_i32 = arith.constant 1 : i32
    %0 = arith.muli %arg1, %c1_i32 : i32
    %1 = arith.addi %0, %arg2 : i32
    %c0_i32 = arith.constant 0 : i32
    %c0_i32_0 = arith.constant 0 : i32
    %c0_i32_1 = arith.constant 0 : i32
    return %arg0, %c0_i32, %1, %c0_i32_0 : i32, i32, i32, i32
  }
  func.func @transform_1(%arg0: i32, %arg1: i32, %arg2: i32) -> (i32, i32, i32, i32) {
    %c1_i32 = arith.constant 1 : i32
    %0 = arith.muli %arg1, %c1_i32 : i32
    %1 = arith.addi %0, %arg2 : i32
    %c0_i32 = arith.constant 0 : i32
    %c0_i32_0 = arith.constant 0 : i32
    %c0_i32_1 = arith.constant 0 : i32
    return %arg0, %c0_i32, %1, %c0_i32_0 : i32, i32, i32, i32
  }
  func.func @transform_2(%arg0: i32, %arg1: i32, %arg2: i32) -> (i32, i32, i32, i32) {
    %c0_i32 = arith.constant 0 : i32
    %c0_i32_0 = arith.constant 0 : i32
    %c0_i32_1 = arith.constant 0 : i32
    return %arg0, %arg1, %c0_i32, %c0_i32_0 : i32, i32, i32, i32
  }
}

</mosaic_0001>

<llo_original>
// kernel: tpu_custom_call.1
$region0: #{tpu_custom_call.1}
  #allocation0 [shape = 'u32[]', space=smem, size = 0x4, offset = 0x4, fixed_abs, tag = 'smem constant byte address 0x4 - core index']
  #allocation1 [shape = 'u32[72,128]{1,0:T(1,128)}', space=vmem, size = 0x9000, scoped, tag = 'internal scratch']
  %s0 = inlined_call_operand.hbm [shape: f32[2,4,2,128], index: 0, kind: input, shape index: {}]
  %s1 = inlined_call_operand.hbm [shape: s32[2,1,2,128], index: 1, kind: input, shape index: {}]
  %s2 = inlined_call_operand.hbm [shape: f32[2,1,2,128], index: 2, kind: output, shape index: {}]
  %s3 = sld [smem:[#allocation0]]
  $region30: #{tpu_custom_call.1} parent=0
    _
  %s5 = ssub.s32 1, %s3
  %s6 = scalar_select 0, %s5, %s3
  $region1: #{tpu_custom_call.1} parent=0
    #allocation2 [shape = 'u8[8192]{0}', space=vmem, size = 0x2000, scoped, tag = 'input window, operand 0, single buffered']
    #allocation3 [shape = 's32[1]{0}', space=sflag, size = 0x4, scoped, tag = 'scoped memory for tpu_custom_call.1']
    #allocation4 [shape = 's32[1]{0}', space=sflag, size = 0x4, scoped, tag = 'scoped memory for tpu_custom_call.1']
    #allocation5 [shape = 'u8[2048]{0}', space=vmem, size = 0x800, scoped, tag = 'input window, operand 1, single buffered']
    #allocation6 [shape = 's32[1]{0}', space=sflag, size = 0x4, scoped, tag = 'scoped memory for tpu_custom_call.1']
    #allocation7 [shape = 'u8[2048]{0}', space=vmem, size = 0x800, scoped, tag = 'output window, operand 0, single buffered']
    %7 = vsyncpa [#allocation3], 0
    %8 = vsyncpa [#allocation6], 0
    %9 = vsyncpa [#allocation4], 0
    // Predicated region
    $region2: #{tpu_custom_call.1} parent=1 // pred_check
      _
    $region3: #{tpu_custom_call.1} parent=1 // pred_check_branch
      %11 = sbr.rel (0) target = $region5
    $region4: #{tpu_custom_call.1} parent=1 // pred_region
      %s12 = sadd.s32 0, 0
      %14 = vsyncadd [#allocation3], 0
      %s15 = smul.addr %s12, 2
      %s16 = scalar_lea.hbm %s0, %s15
      %s17 = sshll.u32 %s16, 4
      %s18 = int_to_ptr.hbm [resolvable:$true] %s17
      %s19 = sshll.u32 [#allocation2], 4
      %s20 = int_to_ptr.vmem [resolvable:$true] %s19
      %25 = dma.hbm_to_vmem [thread:$0]  %s18, 256, %s20, [#allocation3], 32, 32, 2
    $region5: #{tpu_custom_call.1} parent=1 // pred_fallthru
      _
    // Predicated region
    $region6: #{tpu_custom_call.1} parent=1 // pred_check
      _
    $region7: #{tpu_custom_call.1} parent=1 // pred_check_branch
      %27 = sbr.rel (0) target = $region9
    $region8: #{tpu_custom_call.1} parent=1 // pred_region
      %s28 = sadd.s32 0, 0
      %30 = vsyncadd [#allocation6], 0
      %s31 = smul.addr %s28, 2
      %s32 = scalar_lea.hbm %s1, %s31
      %s33 = sshll.u32 %s32, 4
      %s34 = int_to_ptr.hbm [resolvable:$true] %s33
      %s35 = sshll.u32 [#allocation5], 4
      %s36 = int_to_ptr.vmem [resolvable:$true] %s35
      %41 = dma.hbm_to_vmem [thread:$0]  %s34, 64, %s36, [#allocation6], 32, 32, 2
    $region9: #{tpu_custom_call.1} parent=1 // pred_fallthru
      _
    // Predicated region
    $region10: #{tpu_custom_call.1} parent=1 // pred_check
      _
    $region11: #{tpu_custom_call.1} parent=1 // pred_check_branch
      %43 = sbr.rel (0) target = $region13
    $region12: #{tpu_custom_call.1} parent=1 // pred_region
      %45 = dma.done [#allocation3], 256
    $region13: #{tpu_custom_call.1} parent=1 // pred_fallthru
      _
    // Predicated region
    $region14: #{tpu_custom_call.1} parent=1 // pred_check
      _
    $region15: #{tpu_custom_call.1} parent=1 // pred_check_branch
      %47 = sbr.rel (0) target = $region17
    $region16: #{tpu_custom_call.1} parent=1 // pred_region
      %49 = dma.done [#allocation6], 64
    $region17: #{tpu_custom_call.1} parent=1 // pred_fallthru
      _
    %s50 = sadd.s32 0, 0
    %s51 = sadd.s32 0, 0
    %p52 = scmp.eq.s32.totalorder 0, 0
    // Predicated region
    $region18: #{tpu_custom_call.1} parent=1 // pred_check
      %p53 = pneg %p52
    $region19: #{tpu_custom_call.1} parent=1 // pred_check_branch
      %55 = sbr.rel (%p53) target = $region21
    $region20: #{tpu_custom_call.1} parent=1 // pred_region
      %56 = vst [vmem:[#allocation7] sm:$0x3] 0.0
      %57 = vst [vmem:[#allocation7 + $0x2] sm:$0x3] 0.0
    $region21: #{tpu_custom_call.1} parent=1 // pred_fallthru
      _
    %v58 = vld [vmem:[#allocation2] sm:$0x3]
    %v59 = vld [vmem:[#allocation2 + $0x2] sm:$0x3]
    %v60 = vld [vmem:[#allocation2 + $0x4] sm:$0x3]
    %v61 = vld [vmem:[#allocation2 + $0x6] sm:$0x3]
    %v62 = vld [vmem:[#allocation2 + $0x8] sm:$0x3]
    %v63 = vld [vmem:[#allocation2 + $0xa] sm:$0x3]
    %v64 = vld [vmem:[#allocation2 + $0xc] sm:$0x3]
    %v65 = vld [vmem:[#allocation2 + $0xe] sm:$0x3]
    %v66 = vld [vmem:[#allocation5] sm:$0x3]
    %v67 = vld [vmem:[#allocation5 + $0x2] sm:$0x3]
    %v68 = vmax.f32 %v58, %v59
    %v69 = vmax.f32 %v62, %v63
    %v70 = vmax.f32 %v68, %v60
    %v71 = vmax.f32 %v69, %v64
    %v72 = vmax.f32 %v70, %v61
    %v73 = vmax.f32 %v71, %v65
    %v74 = vsub.f32 %v58, %v72
    %v75 = vsub.f32 %v62, %v73
    %v76 = vmul.f32 %v74, 1.442695
    %v77 = vpow.pop %v76
    %v78 = vmul.f32 %v75, 1.442695
    %v79 = vpow.pop %v78
    %v80 = vadd.f32 %v77, 0.0
    %v81 = vadd.f32 %v79, 0.0
    %vm82 = vcmp.eq.s32.totalorder %v66, 0
    %vm83 = vcmp.eq.s32.totalorder %v67, 0
    %v84 = vsel %vm82, %v58, 0.0
    %v85 = vsel %vm83, %v62, 0.0
    %v86 = vadd.f32 %v84, 0.0
    %v87 = vadd.f32 %v85, 0.0
    %v88 = vsub.f32 %v59, %v72
    %v89 = vsub.f32 %v63, %v73
    %v90 = vmul.f32 %v88, 1.442695
    %v91 = vpow.pop %v90
    %v92 = vmul.f32 %v89, 1.442695
    %v93 = vpow.pop %v92
    %v94 = vadd.f32 %v80, %v91
    %v95 = vadd.f32 %v81, %v93
    %vm96 = vcmp.eq.s32.totalorder %v66, 1
    %vm97 = vcmp.eq.s32.totalorder %v67, 1
    %v98 = vsel %vm96, %v59, 0.0
    %v99 = vsel %vm97, %v63, 0.0
    %v100 = vadd.f32 %v86, %v98
    %v101 = vadd.f32 %v87, %v99
    %v102 = vsub.f32 %v60, %v72
    %v103 = vsub.f32 %v64, %v73
    %v104 = vmul.f32 %v102, 1.442695
    %v105 = vpow.pop %v104
    %v106 = vmul.f32 %v103, 1.442695
    %v107 = vpow.pop %v106
    %v108 = vadd.f32 %v94, %v105
    %v109 = vadd.f32 %v95, %v107
    %vm110 = vcmp.eq.s32.totalorder %v66, 2
    %vm111 = vcmp.eq.s32.totalorder %v67, 2
    %v112 = vsel %vm110, %v60, 0.0
    %v113 = vsel %vm111, %v64, 0.0
    %v114 = vadd.f32 %v100, %v112
    %v115 = vadd.f32 %v101, %v113
    %v116 = vsub.f32 %v61, %v72
    %v117 = vsub.f32 %v65, %v73
    %v118 = vmul.f32 %v116, 1.442695
    %v119 = vpow.pop %v118
    %v120 = vmul.f32 %v117, 1.442695
    %v121 = vpow.pop %v120
    %v122 = vadd.f32 %v108, %v119
    %v123 = vadd.f32 %v109, %v121
    %vm124 = vcmp.eq.s32.totalorder %v66, 3
    %vm125 = vcmp.eq.s32.totalorder %v67, 3
    %v126 = vsel %vm124, %v61, 0.0
    %v127 = vsel %vm125, %v65, 0.0
    %v128 = vadd.f32 %v114, %v126
    %v129 = vadd.f32 %v115, %v127
    %v130 = vlog2.pop %v122
    %v131 = vmul.f32 %v130, 0.6931472
    %v132 = vlog2.pop %v123
    %v133 = vmul.f32 %v132, 0.6931472
    %vm134 = vcmp.ge.s32.totalorder %v66, 0
    %vm135 = vcmp.ge.s32.totalorder %v67, 0
    %v136 = vld [vmem:[#allocation7] sm:$0x3]
    %v137 = vld [vmem:[#allocation7 + $0x2] sm:$0x3]
    %v138 = vsub.f32 %v72, %v128
    %v139 = vsub.f32 %v73, %v129
    %v140 = vadd.f32 %v138, %v131
    %v141 = vadd.f32 %v139, %v133
    %v142 = vsel %vm134, %v140, 0.0
    %v143 = vsel %vm135, %v141, 0.0
    %v144 = vadd.f32 %v136, %v142
    %v145 = vadd.f32 %v137, %v143
    %146 = vst [vmem:[#allocation7] sm:$0x3] %v144
    %147 = vst [vmem:[#allocation7 + $0x2] sm:$0x3] %v145
    // Predicated region
    $region22: #{tpu_custom_call.1} parent=1 // pred_check
      _
    $region23: #{tpu_custom_call.1} parent=1 // pred_check_branch
      %149 = sbr.rel (0) target = $region25
    $region24: #{tpu_custom_call.1} parent=1 // pred_region
      %151 = vsyncadd [#allocation4], 0
      %s152 = sshll.u32 [#allocation7], 4
      %s153 = int_to_ptr.vmem [resolvable:$true] %s152
      %s154 = sshll.u32 %s2, 4
      %s155 = int_to_ptr.hbm [resolvable:$true] %s154
      %160 = dma.vmem_to_hbm [thread:$0]  %s153, 64, %s155, [#allocation4], 32, 32, 2
    $region25: #{tpu_custom_call.1} parent=1 // pred_fallthru
      _
    // Predicated region
    $region26: #{tpu_custom_call.1} parent=1 // pred_check
      _
    $region27: #{tpu_custom_call.1} parent=1 // pred_check_branch
      %162 = sbr.rel (0) target = $region29
    $region28: #{tpu_custom_call.1} parent=1 // pred_region
      %164 = dma.done [#allocation4], 64
    $region29: #{tpu_custom_call.1} parent=1 // pred_fallthru
      _
    %165 = vsyncpa [#allocation3], 1
    %166 = vsyncpa [#allocation6], 1
    %167 = vsyncpa [#allocation4], 1

</llo_original>
